<compile_context>
chip_gen: v6e
topology: v6e:2x2x1
jax: 0.10.0
libtpu: 0.0.40
codegen_flags: <defaults>
</compile_context>

<pallas_src>
import functools

import jax
import jax.numpy as jnp
from jax.experimental import pallas as pl
from jax.experimental.pallas import tpu as pltpu


def _dice_kernel(pred_ref, tgt_ref, out_ref, acc_ref, *,
                 ignore, hw, tile_hw, tiles_per_split, ragged):
    s_idx = pl.program_id(1)          # pixel-axis split (v7x 2nd-TC work)
    t = pl.program_id(2)              # pixel tile within the split

    @pl.when(t == 0)
    def _():
        acc_ref[...] = jnp.zeros_like(acc_ref)

    logits = pred_ref[...].astype(jnp.float32)             # (C, T) classes on sublanes
    tgt = tgt_ref[...]                                      # (1, T) int32
    tgt = jnp.where(tgt == ignore, 0, tgt)                  # target[target==ignore] = 0

    if ragged:
        # Last pixel tile overruns H*W: neutralize garbage columns before exp
        # (keeps exp finite; the final mask is folded into inv_s below).
        col0 = (s_idx * tiles_per_split + t) * tile_hw
        cols = col0 + jax.lax.broadcasted_iota(jnp.int32, (1, tile_hw), 1)
        valid = cols < hw                                   # (1, T) bool
        logits = jnp.where(valid, logits, 0.0)

    # softmax over the class (sublane) axis, algebraically folded:
    #   p_c = e_c / s,   sum_c p_c^2 = s2 / s^2,   p_target = e_target / s
    m = jnp.max(logits, axis=0, keepdims=True)              # (1, T)  (overflow guard)
    e = jnp.exp(logits - m)                                  # (C, T)
    s = jnp.sum(e, axis=0, keepdims=True)                    # (1, T)
    s2 = jnp.sum(e * e, axis=0, keepdims=True)               # (1, T)
    classes = jax.lax.broadcasted_iota(jnp.int32, e.shape, 0)
    e_t = jnp.sum(jnp.where(classes == tgt, e, 0.0), axis=0, keepdims=True)

    # 1/s on the EUP (approx) + one Newton step -> f32-accurate, VALU-light.
    inv0 = pl.reciprocal(s, approx=True)
    inv_s = inv0 * (2.0 - s * inv0)

    if ragged:
        # Single mask fold: zeroing inv_s zeroes both per-pixel terms.
        inv_s = jnp.where(valid, inv_s, 0.0)

    inter_p = e_t * inv_s                                    # per-pixel p_target
    asum_p = s2 * (inv_s * inv_s)                            # per-pixel sum_c p_c^2

    acc_ref[0:1, :] += inter_p                               # per-lane intersection partials
    acc_ref[1:2, :] += asum_p                                # per-lane A_sum partials

    @pl.when(t == pl.num_programs(2) - 1)
    def _():
        # In-kernel cross-lane reduction: output is a tiny (2, 1) slab.
        out_ref[...] = jnp.sum(acc_ref[...], axis=1, keepdims=True)


def _pick_tile(hw, max_tile):
    """Returns (tile_hw, ragged). tile_hw is a multiple of 128 or == hw."""
    if hw <= max_tile:
        return hw, False                  # single full-row tile, never ragged
    top = max_tile - (max_tile % 128)
    for cand in range(top, 0, -128):
        if hw % cand == 0:
            return cand, False            # evenly dividing multiple of 128
    return top, True                      # ragged last tile, masked in-kernel


def dice_loss(pred, target, *, num_classes=19, ignore=255, max_tile=32768,
              smooth=1e-4, pixel_splits=2):
    """pred: (N, C, H, W) float logits (f32 or bf16); target: (N, H, W) int labels."""
    N, C, H, W = pred.shape
    assert C == num_classes
    hw = H * W

    tile_hw, ragged = _pick_tile(hw, max_tile)
    num_t = pl.cdiv(hw, tile_hw)

    # Split the pixel-tile axis across a "parallel" grid axis so v7x's second
    # TensorCore has work even for N == 1 (neutral on single-TC v5e / v6e).
    splits = pixel_splits if (pixel_splits > 1 and num_t % pixel_splits == 0) else 1
    tiles_per_split = num_t // splits

    # Free trailing-dim reshapes only (no transpose / pad / cast HBM passes).
    pred3 = pred.reshape(N, C, hw)
    tgt3 = target.reshape(N, 1, hw).astype(jnp.int32)

    kernel = functools.partial(
        _dice_kernel, ignore=ignore, hw=hw, tile_hw=tile_hw,
        tiles_per_split=tiles_per_split, ragged=ragged,
    )

    cost = pl.CostEstimate(
        flops=8 * N * C * hw,
        transcendentals=N * C * hw,
        bytes_accessed=N * C * hw * pred.dtype.itemsize + N * hw * 4,
    )

    partials = pl.pallas_call(
        kernel,
        out_shape=jax.ShapeDtypeStruct((N * splits, 2, 1), jnp.float32),
        grid=(N, splits, tiles_per_split),
        in_specs=[
            pl.BlockSpec((None, C, tile_hw),
                         lambda n, s, t: (n, 0, s * tiles_per_split + t)),
            pl.BlockSpec((None, 1, tile_hw),
                         lambda n, s, t: (n, 0, s * tiles_per_split + t)),
        ],
        out_specs=pl.BlockSpec((None, 2, 1), lambda n, s, t: (n * splits + s, 0, 0)),
        scratch_shapes=[pltpu.VMEM((2, tile_hw), jnp.float32)],
        compiler_params=pltpu.CompilerParams(
            dimension_semantics=("parallel", "parallel", "arbitrary"),
            vmem_limit_bytes=40 << 20,
        ),
        cost_estimate=cost,
    )(pred3, tgt3)

    intersection = jnp.sum(partials[:, 0, 0])
    a_sum = jnp.sum(partials[:, 1, 0])
    b_sum = jnp.float32(N * hw)  # one-hot => sum(gt^2) == #pixels (ignore -> class 0)
    return 1.0 - (2.0 * intersection + smooth) / (a_sum + b_sum + smooth)


def _dice_loss_ref(pred, target, *, num_classes=19, ignore=255, smooth=1e-4):
    p = jax.nn.softmax(pred.astype(jnp.float32), axis=1)
    tgt = jnp.where(target == ignore, 0, target).astype(jnp.int32)
    gt = jax.nn.one_hot(tgt, num_classes, dtype=jnp.float32)        # (N,H,W,C)
    gt = jnp.transpose(gt, (0, 3, 1, 2))                            # (N,C,H,W)
    iflat = p.reshape(-1)
    tflat = gt.reshape(-1)
    inter = jnp.sum(iflat * tflat)
    a = jnp.sum(iflat * iflat)
    b = jnp.sum(tflat * tflat)
    return 1.0 - (2.0 * inter + smooth) / (a + b + smooth)


if __name__ == "__main__":
    key = jax.random.PRNGKey(0)
    k1, k2, k3, k4, k5 = jax.random.split(key, 5)

    # Main check: default config, evenly divided pixel axis (single tile).
    N, C, H, W = 2, 19, 16, 16
    pred = jax.random.normal(k1, (N, C, H, W), dtype=jnp.float32)
    target = jax.random.randint(k2, (N, H, W), 0, C, dtype=jnp.int32)
    ignore_mask = jax.random.uniform(k3, (N, H, W)) < 0.1
    target = jnp.where(ignore_mask, 255, target)

    loss = jax.block_until_ready(dice_loss(pred, target, num_classes=C, ignore=255))
    ref = _dice_loss_ref(pred, target, num_classes=C, ignore=255)
    assert jnp.allclose(loss, ref, atol=1e-5, rtol=1e-5), (loss, ref)

    # Secondary check: ragged masked path + pixel-axis split (hw=169, tile=128,
    # num_t=2 -> splits=2, one tile per split, second tile overruns and is masked).
    N2, H2, W2 = 1, 13, 13
    pred2 = jax.random.normal(k4, (N2, C, H2, W2), dtype=jnp.float32)
    target2 = jax.random.randint(k5, (N2, H2, W2), 0, C, dtype=jnp.int32)

    loss2 = jax.block_until_ready(
        dice_loss(pred2, target2, num_classes=C, ignore=255, max_tile=128)
    )
    ref2 = _dice_loss_ref(pred2, target2, num_classes=C, ignore=255)
    assert jnp.allclose(loss2, ref2, atol=1e-5, rtol=1e-5), (loss2, ref2)

    print("KERNEL_OK")
</pallas_src>

<mosaic_0001>
module attributes {stable_mosaic.version = 11 : i64} {
  func.func @_dice_kernel(%arg0: i32, %arg1: i32, %arg2: i32, %arg3: memref<1x19x256xf32, #tpu.memory_space<vmem>>, %arg4: memref<1x1x256xi32, #tpu.memory_space<vmem>>, %arg5: memref<1x2x1xf32, #tpu.memory_space<vmem>>, %arg6: memref<2x256xf32, #tpu.memory_space<vmem>>) attributes {dimension_semantics = [#tpu.dimension_semantics<parallel>, #tpu.dimension_semantics<parallel>, #tpu.dimension_semantics<arbitrary>], iteration_bounds = array<i64: 2, 1, 1>, scalar_prefetch = 0 : i64, scratch_operands = 1 : i64, tpu.core_type = #tpu.core_type<tc>, window_params = [{transform_indices = @transform_0, window_bounds = array<i64: 1, 19, 256>}, {transform_indices = @transform_1, window_bounds = array<i64: 1, 1, 256>}, {transform_indices = @transform_2, window_bounds = array<i64: 1, 2, 1>}]} {
    %c0_i32 = arith.constant 0 : i32
    %0 = arith.cmpi eq, %arg2, %c0_i32 : i32
    %1 = arith.extui %0 : i1 to i32
    %c0_i32_0 = arith.constant 0 : i32
    %2 = arith.cmpi ne, %1, %c0_i32_0 : i32
    scf.if %2 {
      %cst_21 = arith.constant 0.000000e+00 : f32
      %45 = vector.broadcast %cst_21 : f32 to vector<2x256xf32>
      %c0_22 = arith.constant 0 : index
      %c0_23 = arith.constant 0 : index
      %46 = vector.load %arg6[%c0_22, %c0_23] : memref<2x256xf32, #tpu.memory_space<vmem>>, vector<2x256xf32>
      tpu.vector_store %arg6[%c0_22, %c0_23], %45 {strides = array<i32>} : memref<2x256xf32, #tpu.memory_space<vmem>>, vector<2x256xf32>,
    } else {
    }
    %c0 = arith.constant 0 : index
    %c0_1 = arith.constant 0 : index
    %c0_2 = arith.constant 0 : index
    %3 = vector.load %arg3[%c0, %c0_1, %c0_2] : memref<1x19x256xf32, #tpu.memory_space<vmem>>, vector<1x19x256xf32>
    %4 = vector.shape_cast %3 : vector<1x19x256xf32> to vector<19x256xf32>
    %c0_3 = arith.constant 0 : index
    %c0_4 = arith.constant 0 : index
    %c0_5 = arith.constant 0 : index
    %5 = vector.load %arg4[%c0_3, %c0_4, %c0_5] : memref<1x1x256xi32, #tpu.memory_space<vmem>>, vector<1x1x256xi32>
    %6 = vector.shape_cast %5 : vector<1x1x256xi32> to vector<1x256xi32>
    %c255_i32 = arith.constant 255 : i32
    %7 = vector.broadcast %c255_i32 : i32 to vector<1x256xi32>
    %8 = arith.cmpi eq, %6, %7 : vector<1x256xi32>
    %c0_i32_6 = arith.constant 0 : i32
    %9 = vector.broadcast %c0_i32_6 : i32 to vector<1x256xi32>
    %10 = arith.select %8, %9, %6 : vector<1x256xi1>, vector<1x256xi32>
    %cst = arith.constant dense<0xFF800000> : vector<256xf32>
    %11 = vector.multi_reduction <maximumf>, %4, %cst [0] : vector<19x256xf32> to vector<256xf32>
    %12 = vector.shape_cast %11 : vector<256xf32> to vector<1x256xf32>
    %13 = vector.broadcast %12 : vector<1x256xf32> to vector<19x256xf32>
    %14 = arith.subf %4, %13 : vector<19x256xf32>
    %15 = math.exp %14 : vector<19x256xf32>
    %cst_7 = arith.constant dense<0.000000e+00> : vector<256xf32>
    %16 = vector.multi_reduction <add>, %15, %cst_7 [0] : vector<19x256xf32> to vector<256xf32>
    %17 = vector.shape_cast %16 : vector<256xf32> to vector<1x256xf32>
    %18 = arith.mulf %15, %15 : vector<19x256xf32>
    %cst_8 = arith.constant dense<0.000000e+00> : vector<256xf32>
    %19 = vector.multi_reduction <add>, %18, %cst_8 [0] : vector<19x256xf32> to vector<256xf32>
    %20 = vector.shape_cast %19 : vector<256xf32> to vector<1x256xf32>
    %21 = tpu.iota {dimensions = array<i32: 0>} : vector<19x256xi32>
    %22 = vector.broadcast %10 : vector<1x256xi32> to vector<19x256xi32>
    %23 = arith.cmpi eq, %21, %22 : vector<19x256xi32>
    %cst_9 = arith.constant 0.000000e+00 : f32
    %24 = vector.broadcast %cst_9 : f32 to vector<19x256xf32>
    %25 = arith.select %23, %15, %24 : vector<19x256xi1>, vector<19x256xf32>
    %cst_10 = arith.constant dense<0.000000e+00> : vector<256xf32>
    %26 = vector.multi_reduction <add>, %25, %cst_10 [0] : vector<19x256xf32> to vector<256xf32>
    %27 = vector.shape_cast %26 : vector<256xf32> to vector<1x256xf32>
    %28 = tpu.reciprocal %17 {approx = true} : vector<1x256xf32> -> vector<1x256xf32>
    %29 = arith.mulf %17, %28 : vector<1x256xf32>
    %cst_11 = arith.constant 2.000000e+00 : f32
    %30 = vector.broadcast %cst_11 : f32 to vector<1x256xf32>
    %31 = arith.subf %30, %29 : vector<1x256xf32>
    %32 = arith.mulf %28, %31 : vector<1x256xf32>
    %33 = arith.mulf %27, %32 : vector<1x256xf32>
    %34 = arith.mulf %32, %32 : vector<1x256xf32>
    %35 = arith.mulf %20, %34 : vector<1x256xf32>
    %c0_12 = arith.constant 0 : index
    %c0_13 = arith.constant 0 : index
    %36 = vector.load %arg6[%c0_12, %c0_13] : memref<2x256xf32, #tpu.memory_space<vmem>>, vector<1x256xf32>
    %37 = arith.addf %36, %33 : vector<1x256xf32>
    %c0_14 = arith.constant 0 : index
    %c0_15 = arith.constant 0 : index
    %38 = vector.load %arg6[%c0_14, %c0_15] : memref<2x256xf32, #tpu.memory_space<vmem>>, vector<1x256xf32>
    tpu.vector_store %arg6[%c0_14, %c0_15], %37 {strides = array<i32>} : memref<2x256xf32, #tpu.memory_space<vmem>>, vector<1x256xf32>,
    %c1 = arith.constant 1 : index
    %c0_16 = arith.constant 0 : index
    %39 = vector.load %arg6[%c1, %c0_16] : memref<2x256xf32, #tpu.memory_space<vmem>>, vector<1x256xf32>
    %40 = arith.addf %39, %35 : vector<1x256xf32>
    %c1_17 = arith.constant 1 : index
    %c0_18 = arith.constant 0 : index
    %41 = vector.load %arg6[%c1_17, %c0_18] : memref<2x256xf32, #tpu.memory_space<vmem>>, vector<1x256xf32>
    tpu.vector_store %arg6[%c1_17, %c0_18], %40 {strides = array<i32>} : memref<2x256xf32, #tpu.memory_space<vmem>>, vector<1x256xf32>,
    %c0_i32_19 = arith.constant 0 : i32
    %42 = arith.cmpi eq, %arg2, %c0_i32_19 : i32
    %43 = arith.extui %42 : i1 to i32
    %c0_i32_20 = arith.constant 0 : i32
    %44 = arith.cmpi ne, %43, %c0_i32_20 : i32
    scf.if %44 {
      %c0_21 = arith.constant 0 : index
      %c0_22 = arith.constant 0 : index
      %45 = vector.load %arg6[%c0_21, %c0_22] : memref<2x256xf32, #tpu.memory_space<vmem>>, vector<2x256xf32>
      %cst_23 = arith.constant dense<0.000000e+00> : vector<2xf32>
      %46 = vector.multi_reduction <add>, %45, %cst_23 [1] : vector<2x256xf32> to vector<2xf32>
      %47 = vector.shape_cast %46 : vector<2xf32> to vector<2x1xf32>
      %c0_24 = arith.constant 0 : index
      %c0_25 = arith.constant 0 : index
      %c0_26 = arith.constant 0 : index
      %48 = vector.load %arg5[%c0_24, %c0_25, %c0_26] : memref<1x2x1xf32, #tpu.memory_space<vmem>>, vector<1x2x1xf32>
      %49 = vector.shape_cast %48 : vector<1x2x1xf32> to vector<2x1xf32>
      %50 = vector.shape_cast %47 : vector<2x1xf32> to vector<1x2x1xf32>
      tpu.vector_store %arg5[%c0_24, %c0_25, %c0_26], %50 {strides = array<i32>} : memref<1x2x1xf32, #tpu.memory_space<vmem>>, vector<1x2x1xf32>,
    } else {
    }
    return
  }
  func.func @transform_0(%arg0: i32, %arg1: i32, %arg2: i32) -> (i32, i32, i32) {
    %c1_i32 = arith.constant 1 : i32
    %0 = arith.muli %arg1, %c1_i32 : i32
    %1 = arith.addi %0, %arg2 : i32
    %c0_i32 = arith.constant 0 : i32
    %c0_i32_0 = arith.constant 0 : i32
    return %arg0, %c0_i32, %1 : i32, i32, i32
  }
  func.func @transform_1(%arg0: i32, %arg1: i32, %arg2: i32) -> (i32, i32, i32) {
    %c1_i32 = arith.constant 1 : i32
    %0 = arith.muli %arg1, %c1_i32 : i32
    %1 = arith.addi %0, %arg2 : i32
    %c0_i32 = arith.constant 0 : i32
    %c0_i32_0 = arith.constant 0 : i32
    return %arg0, %c0_i32, %1 : i32, i32, i32
  }
  func.func @transform_2(%arg0: i32, %arg1: i32, %arg2: i32) -> (i32, i32, i32) {
    %c1_i32 = arith.constant 1 : i32
    %0 = arith.muli %arg0, %c1_i32 : i32
    %1 = arith.addi %0, %arg1 : i32
    %c0_i32 = arith.constant 0 : i32
    %c0_i32_0 = arith.constant 0 : i32
    %c0_i32_1 = arith.constant 0 : i32
    return %1, %c0_i32, %c0_i32_0 : i32, i32, i32
  }
}

</mosaic_0001>

<llo_original>
// kernel: tpu_custom_call.1
$region0: #{tpu_custom_call.1}
  #allocation0 [shape = 'u32[]', space=smem, size = 0x4, offset = 0x4, fixed_abs, tag = 'smem constant byte address 0x4 - core index']
  #allocation1 [shape = 'u32[144,128]{1,0:T(1,128)}', space=vmem, size = 0x12000, scoped, tag = 'internal scratch']
  #allocation2 [shape = 'f32[2,256]{1,0:T(2,128)}', space=vmem, size = 0x800, scoped, tag = 'scratch operand']
  %s0 = inlined_call_operand.vmem [shape: f32[2,19,256], index: 0, kind: input, shape index: {}]
  %s1 = inlined_call_operand.vmem [shape: s32[2,1,256], index: 1, kind: input, shape index: {}]
  %s2 = inlined_call_operand.vmem [shape: f32[2,2,1], index: 2, kind: output, shape index: {}]
  %s3 = sld [smem:[#allocation0]]
  $region49: #{tpu_custom_call.1} parent=0
    _
  %s5 = ssub.s32 1, %s3
  %s6 = scalar_select 0, %s5, %s3
  loop: start=0, step=1, limit=4
  $region2: #{tpu_custom_call.1} parent=0 // loop_pre_header
    _
  $region3: #{tpu_custom_call.1} parent=0 // loop_header
    %s8 = sphi 0, %s12
    %p9 = scmp.ge.s32.totalorder %s8, 4
    %s15 = sphi 0, %s34
    %s16 = sphi 0, %s30
    %s17 = sphi 0, %s26
    %s18 = sphi 0, %s15
    %s19 = sphi 0, %s16
    %s20 = sphi 0, %s17
    %s21 = sphi 0, %s18
    %s22 = sphi 0, %s19
    %s23 = sphi 0, %s20
    %s41 = sphi 0, %s43
    %s44 = sphi 0, %s41
    %s45 = sphi 0, %s44
    %s61 = sphi 0, %s45
    %s71 = sphi 0, %s73
    %s74 = sphi 0, %s71
    %s75 = sphi 0, %s74
    %s91 = sphi 0, %s75
    %s99 = sphi 0, %s101
    %s102 = sphi 0, %s99
    %s103 = sphi 0, %s102
    %s119 = sphi 0, %s103
  $region4: #{tpu_custom_call.1} parent=0 // loop_header_branch
    %11 = sbr.rel (%p9) target = $region8
  $region5: #{tpu_custom_call.1} parent=0 // loop_body
    %s13 = ssub.s32 %s8, 1
    %s14 = ssub.s32 %s8, 2
    %s24 = sadd.s32 1, %s17
    %p25 = scmp.ge.s32.totalorder %s24, 1
    %s26 = scalar_select %p25, 0, %s24
    %s27 = sadd.s32 1, %s16
    %s28 = scalar_select %p25, %s27, %s16
    %p29 = scmp.ge.s32.totalorder %s28, 1
    %s30 = scalar_select %p29, 0, %s28
    %s31 = sadd.s32 1, %s15
    %s32 = scalar_select %p29, %s31, %s15
    %p33 = scmp.ge.s32.totalorder %s32, 2
    %s34 = scalar_select %p33, 0, %s32
    %s35 = sadd.s32 %s16, %s17
    %s36 = sadd.s32 %s30, %s26
    %s37 = ssub.s32 %s15, %s34
    %s38 = ssub.s32 %s35, %s36
    %s39 = sor.u32 %s37, %s38
    %p40 = scmp.eq.s32.totalorder %s39, 0
    %s42 = sadd.s32 %s41, 1
    %s43 = scalar_select %p40, %s41, %s42
    %p46 = pneg %p40
    %p47 = scmp.eq.s32.totalorder %s8, 1
    %p48 = por %p46, %p47
    %p49 = scmp.ne.s32.totalorder %s41, %s44
    %p50 = scmp.eq.s32.totalorder %s8, 0
    %p51 = por %p49, %p50
    %p52 = scmp.ne.s32.totalorder %s41, %s44
    %p53 = scmp.eq.s32.totalorder %s13, 1
    %p54 = por %p52, %p53
    %p55 = scmp.ne.s32.totalorder %s44, %s45
    %p56 = scmp.eq.s32.totalorder %s13, 0
    %p57 = por %p55, %p56
    %p58 = scmp.ne.s32.totalorder %s44, %s45
    %p59 = scmp.eq.s32.totalorder %s14, 1
    %p60 = por %p58, %p59
    %p62 = scmp.ne.s32.totalorder %s45, %s61
    %p63 = scmp.eq.s32.totalorder %s14, 0
    %p64 = por %p62, %p63
    %s65 = sadd.s32 %s16, %s17
    %s66 = sadd.s32 %s30, %s26
    %s67 = ssub.s32 %s15, %s34
    %s68 = ssub.s32 %s65, %s66
    %s69 = sor.u32 %s67, %s68
    %p70 = scmp.eq.s32.totalorder %s69, 0
    %s72 = sadd.s32 %s71, 1
    %s73 = scalar_select %p70, %s71, %s72
    %p76 = pneg %p70
    %p77 = scmp.eq.s32.totalorder %s8, 1
    %p78 = por %p76, %p77
    %p79 = scmp.ne.s32.totalorder %s71, %s74
    %p80 = scmp.eq.s32.totalorder %s8, 0
    %p81 = por %p79, %p80
    %p82 = scmp.ne.s32.totalorder %s71, %s74
    %p83 = scmp.eq.s32.totalorder %s13, 1
    %p84 = por %p82, %p83
    %p85 = scmp.ne.s32.totalorder %s74, %s75
    %p86 = scmp.eq.s32.totalorder %s13, 0
    %p87 = por %p85, %p86
    %p88 = scmp.ne.s32.totalorder %s74, %s75
    %p89 = scmp.eq.s32.totalorder %s14, 1
    %p90 = por %p88, %p89
    %p92 = scmp.ne.s32.totalorder %s75, %s91
    %p93 = scmp.eq.s32.totalorder %s14, 0
    %p94 = por %p92, %p93
    %s95 = sadd.s32 %s15, %s16
    %s96 = sadd.s32 %s34, %s30
    %s97 = ssub.s32 %s95, %s96
    %p98 = scmp.eq.s32.totalorder %s97, 0
    %s100 = sadd.s32 %s99, 1
    %s101 = scalar_select %p98, %s99, %s100
    %p104 = pneg %p98
    %p105 = scmp.eq.s32.totalorder %s8, 1
    %p106 = por %p104, %p105
    %p107 = scmp.ne.s32.totalorder %s99, %s102
    %p108 = scmp.eq.s32.totalorder %s8, 0
    %p109 = por %p107, %p108
    %p110 = scmp.ne.s32.totalorder %s99, %s102
    %p111 = scmp.eq.s32.totalorder %s13, 1
    %p112 = por %p110, %p111
    %p113 = scmp.ne.s32.totalorder %s102, %s103
    %p114 = scmp.eq.s32.totalorder %s13, 0
    %p115 = por %p113, %p114
    %p116 = scmp.ne.s32.totalorder %s102, %s103
    %p117 = scmp.eq.s32.totalorder %s14, 1
    %p118 = por %p116, %p117
    %p120 = scmp.ne.s32.totalorder %s103, %s119
    %p121 = scmp.eq.s32.totalorder %s14, 0
    %p122 = por %p120, %p121
    %p123 = scmp.le.s32.totalorder 1, %s8
    %p124 = scmp.lt.s32.totalorder %s8, 3
    %p125 = pnand %p123, %p124
    %p126 = pneg %p125
    // Predicated region
    $region9: #{tpu_custom_call.1} parent=5 // pred_check
      _
    $region10: #{tpu_custom_call.1} parent=5 // pred_check_branch
      %128 = sbr.rel (%p125) target = $region12
    $region11: #{tpu_custom_call.1} parent=5 // pred_region
      %s129 = ssub.s32 %s8, 1
    $region12: #{tpu_custom_call.1} parent=5 // pred_fallthru
      _
    %p130 = scmp.lt.s32.totalorder %s8, 2
    // Predicated region
    $region13: #{tpu_custom_call.1} parent=5 // pred_check
      %p131 = pneg %p130
    $region14: #{tpu_custom_call.1} parent=5 // pred_check_branch
      %133 = sbr.rel (%p131) target = $region16
    $region15: #{tpu_custom_call.1} parent=5 // pred_region
      // Predicated region
      $region17: #{tpu_custom_call.1} parent=15 // pred_check
        %p134 = pneg %p51
      $region18: #{tpu_custom_call.1} parent=15 // pred_check_branch
        %136 = sbr.rel (%p134) target = $region20
      $region19: #{tpu_custom_call.1} parent=15 // pred_region
        %s137 = sadd.s32 %s16, %s17
        %s138 = smul.u32 2, %s137
        %p139 = scmp.lt.s32.totalorder %s15, 1
        %s140 = scalar_select %p139, %s15, 1
        %p141 = scmp.lt.s32.totalorder %s138, 1
        %s142 = scalar_select %p141, %s138, 1
        %s143 = smul.addr %s140, 6
        %s144 = sadd.s32 %s142, %s143
        %s145 = smul.addr %s144, 8
        %s146 = scalar_lea.vmem %s0, %s145
        %s147 = sadd.s32 %s16, %s17
        %s148 = smul.u32 2, %s147
      $region20: #{tpu_custom_call.1} parent=15 // pred_fallthru
        _
      // Predicated region
      $region21: #{tpu_custom_call.1} parent=15 // pred_check
        %p149 = pneg %p81
      $region22: #{tpu_custom_call.1} parent=15 // pred_check_branch
        %151 = sbr.rel (%p149) target = $region24
      $region23: #{tpu_custom_call.1} parent=15 // pred_region
        %s152 = sadd.s32 %s16, %s17
        %s153 = smul.u32 2, %s152
        %p154 = scmp.lt.s32.totalorder %s15, 1
        %s155 = scalar_select %p154, %s15, 1
        %p156 = scmp.lt.s32.totalorder %s153, 1
        %s157 = scalar_select %p156, %s153, 1
        %s158 = smul.addr %s155, 2
        %s159 = sadd.s32 %s157, %s158
        %s160 = scalar_lea.vmem %s1, %s159
        %s161 = sadd.s32 %s16, %s17
        %s162 = smul.u32 2, %s161
      $region24: #{tpu_custom_call.1} parent=15 // pred_fallthru
        _
    $region16: #{tpu_custom_call.1} parent=5 // pred_fallthru
      _
    %p163 = scmp.le.s32.totalorder 1, %s8
    %p164 = scmp.lt.s32.totalorder %s8, 3
    %p165 = pnand %p163, %p164
    %p166 = pneg %p165
    // Predicated region
    $region25: #{tpu_custom_call.1} parent=5 // pred_check
      _
    $region26: #{tpu_custom_call.1} parent=5 // pred_check_branch
      %168 = sbr.rel (%p165) target = $region28
    $region27: #{tpu_custom_call.1} parent=5 // pred_region
      %s169 = ssub.s32 %s8, 1
      %s170 = sadd.s32 %s19, %s20
      %s171 = smul.u32 2, %s170
      %p172 = scmp.lt.s32.totalorder %s18, 1
      %s173 = scalar_select %p172, %s18, 1
      %p174 = scmp.lt.s32.totalorder %s171, 1
      %s175 = scalar_select %p174, %s171, 1
      %s176 = smul.addr %s173, 6
      %s177 = sadd.s32 %s175, %s176
      %s178 = smul.addr %s177, 8
      %s179 = scalar_lea.vmem %s0, %s178
      %p180 = pneg %p57
      %p181 = pneg %p54
      %s182 = sadd.s32 %s19, %s20
      %s183 = smul.u32 2, %s182
      %p184 = scmp.lt.s32.totalorder %s18, 1
      %s185 = scalar_select %p184, %s18, 1
      %p186 = scmp.lt.s32.totalorder %s183, 1
      %s187 = scalar_select %p186, %s183, 1
      %s188 = smul.addr %s185, 2
      %s189 = sadd.s32 %s187, %s188
      %s190 = scalar_lea.vmem %s1, %s189
      %p191 = pneg %p87
      %p192 = pneg %p84
      %p193 = pneg %p115
      %p194 = pneg %p112
      %s195 = sadd.s32 %s18, %s19
      %p196 = scmp.lt.s32.totalorder %s195, 1
      %s197 = scalar_select %p196, %s195, 1
      %s198 = smul.addr %s197, 2
      %s199 = scalar_lea.vmem %s2, %s198
      %s200 = sadd.s32 %s19, %s20
      %s201 = smul.u32 2, %s200
      %p202 = scmp.lt.s32.totalorder %s18, 1
      %s203 = scalar_select %p202, %s18, 1
      %p204 = scmp.lt.s32.totalorder %s201, 1
      %s205 = scalar_select %p204, %s201, 1
      %s206 = smul.addr %s203, 6
      %s207 = sadd.s32 %s205, %s206
      %s208 = smul.addr %s207, 8
      %s209 = scalar_lea.vmem %s0, %s208
      %s210 = sadd.s32 %s19, %s20
      %s211 = smul.u32 2, %s210
      %s212 = sadd.s32 %s19, %s20
      %s213 = smul.u32 2, %s212
      %p214 = scmp.lt.s32.totalorder %s18, 1
      %s215 = scalar_select %p214, %s18, 1
      %p216 = scmp.lt.s32.totalorder %s213, 1
      %s217 = scalar_select %p216, %s213, 1
      %s218 = smul.addr %s215, 2
      %s219 = sadd.s32 %s217, %s218
      %s220 = scalar_lea.vmem %s1, %s219
      %s221 = sadd.s32 %s19, %s20
      %s222 = smul.u32 2, %s221
      %s223 = sadd.s32 %s18, %s19
      %p224 = scmp.lt.s32.totalorder %s223, 1
      %s225 = scalar_select %p224, %s223, 1
      %s226 = smul.addr %s225, 2
      %s227 = scalar_lea.vmem %s2, %s226
      %s228 = sadd.s32 %s18, %s19
      %p229 = scmp.eq.s32.totalorder %s20, 0
      // Predicated region
      $region29: #{tpu_custom_call.1} parent=27 // pred_check
        %p230 = pneg %p229
      $region30: #{tpu_custom_call.1} parent=27 // pred_check_branch
        %232 = sbr.rel (%p230) target = $region32
      $region31: #{tpu_custom_call.1} parent=27 // pred_region
        %233 = vst [vmem:[#allocation2] sm:$0xf] 0.0
      $region32: #{tpu_custom_call.1} parent=27 // pred_fallthru
        _
      %v234 = vld [vmem:[%s209] sm:$0xff]
      %v235 = vld [vmem:[%s209 + $0x8] sm:$0xff]
      %v236 = vld [vmem:[%s209 + $0x10] sm:$0xff]
      %v237 = vld [vmem:[%s209 + $0x18] sm:$0xff]
      %v238 = vld [vmem:[%s209 + $0x20] sm:$0x7]
      %v239 = vld [vmem:[%s209 + $0x28] sm:$0x7]
      %v240 = vld [vmem:[%s220] sm:$0x3]
      %vm241 = vcmp.eq.s32.totalorder %v240, 255
      %v242 = vsel %vm241, 0, %v240
      %vm243 = vcmask 1042432
      %v244 = vsel %vm243, %v238, -inf
      %v245 = vmax.f32 %v234, %v244
      %v246 = vmax.f32 %v245, %v236
      %v247 = vrot.slane %v246, 4
      %v248 = vmax.f32 %v246, %v247
      %v249 = vrot.slane %v248, 2
      %v250 = vmax.f32 %v248, %v249
      %v251 = vrot.slane %v250, 1
      %v252 = vmax.f32 %v250, %v251
      %v253 = vsel %vm243, %v239, -inf
      %v254 = vmax.f32 %v235, %v253
      %v255 = vmax.f32 %v254, %v237
      %v256 = vrot.slane %v255, 4
      %v257 = vmax.f32 %v255, %v256
      %v258 = vrot.slane %v257, 2
      %v259 = vmax.f32 %v257, %v258
      %v260 = vrot.slane %v259, 1
      %v261 = vmax.f32 %v259, %v260
      %v262 = vsub.f32 %v234, %v252
      %v263 = vsub.f32 %v235, %v261
      %v264 = vsub.f32 %v236, %v252
      %v265 = vsub.f32 %v237, %v261
      %v266 = vsub.f32 %v238, %v252
      %v267 = vsub.f32 %v239, %v261
      %v268 = vmul.f32 %v262, 1.442695
      %v269 = vpow.pop %v268
      %v270 = vmul.f32 %v263, 1.442695
      %v271 = vpow.pop %v270
      %v272 = vmul.f32 %v264, 1.442695
      %v273 = vpow.pop %v272
      %v274 = vmul.f32 %v265, 1.442695
      %v275 = vpow.pop %v274
      %v276 = vmul.f32 %v266, 1.442695
      %v277 = vpow.pop %v276
      %v278 = vmul.f32 %v267, 1.442695
      %v279 = vpow.pop %v278
      %v280 = vadd.f32 %v269, %v273
      %v281 = vsel %vm243, %v277, 0.0
      %v282 = vadd.f32 %v280, %v281
      %v283 = vrot.slane %v282, 4
      %v284 = vadd.f32 %v282, %v283
      %v285 = vrot.slane %v284, 2
      %v286 = vadd.f32 %v284, %v285
      %v287 = vrot.slane %v286, 1
      %v288 = vadd.f32 %v286, %v287
      %v289 = vadd.f32 %v271, %v275
      %v290 = vsel %vm243, %v279, 0.0
      %v291 = vadd.f32 %v289, %v290
      %v292 = vrot.slane %v291, 4
      %v293 = vadd.f32 %v291, %v292
      %v294 = vrot.slane %v293, 2
      %v295 = vadd.f32 %v293, %v294
      %v296 = vrot.slane %v295, 1
      %v297 = vadd.f32 %v295, %v296
      %v298 = vmul.f32 %v269, %v269
      %v299 = vmul.f32 %v271, %v271
      %v300 = vmul.f32 %v273, %v273
      %v301 = vmul.f32 %v275, %v275
      %v302 = vmul.f32 %v277, %v277
      %v303 = vmul.f32 %v279, %v279
      %v304 = vadd.f32 %v298, %v300
      %v305 = vsel %vm243, %v302, 0.0
      %v306 = vadd.f32 %v304, %v305
      %v307 = vrot.slane %v306, 4
      %v308 = vadd.f32 %v306, %v307
      %v309 = vrot.slane %v308, 2
      %v310 = vadd.f32 %v308, %v309
      %v311 = vrot.slane %v310, 1
      %v312 = vadd.f32 %v310, %v311
      %v313 = vadd.f32 %v299, %v301
      %v314 = vsel %vm243, %v303, 0.0
      %v315 = vadd.f32 %v313, %v314
      %v316 = vrot.slane %v315, 4
      %v317 = vadd.f32 %v315, %v316
      %v318 = vrot.slane %v317, 2
      %v319 = vadd.f32 %v317, %v318
      %v320 = vrot.slane %v319, 1
      %v321 = vadd.f32 %v319, %v320
      %v322 = vlaneseq
      %v323 = vshrl.u32 %v322, 7
      %v324 = vadd.s32 %v323, 8
      %v325 = vadd.s32 %v323, 16
      %v326 = vlaneseq
      %v327 = vshrl.u32 %v326, 7
      %v328 = vsub.s32 0, %v327
      %v329 = vrot.slane %v242, %v328
      %v330 = vlaneseq
      %v331 = vshrl.u32 %v330, 7
      %v332 = vsub.s32 1, %v331
      %v333 = vrot.slane %v242, %v332
      %vm334 = vcmp.eq.s32.totalorder %v323, %v329
      %vm335 = vcmp.eq.s32.totalorder %v323, %v333
      %vm336 = vcmp.eq.s32.totalorder %v324, %v329
      %vm337 = vcmp.eq.s32.totalorder %v324, %v333
      %vm338 = vcmp.eq.s32.totalorder %v325, %v329
      %vm339 = vcmp.eq.s32.totalorder %v325, %v333
      %v340 = vsel %vm334, %v269, 0.0
      %v341 = vsel %vm335, %v271, 0.0
      %v342 = vsel %vm336, %v273, 0.0
      %v343 = vsel %vm337, %v275, 0.0
      %v344 = vsel %vm338, %v277, 0.0
      %v345 = vsel %vm339, %v279, 0.0
      %v346 = vadd.f32 %v340, %v342
      %v347 = vsel %vm243, %v344, 0.0
      %v348 = vadd.f32 %v346, %v347
      %v349 = vrot.slane %v348, 4
      %v350 = vadd.f32 %v348, %v349
      %v351 = vrot.slane %v350, 2
      %v352 = vadd.f32 %v350, %v351
      %v353 = vrot.slane %v352, 1
      %v354 = vadd.f32 %v352, %v353
      %v355 = vadd.f32 %v341, %v343
      %v356 = vsel %vm243, %v345, 0.0
      %v357 = vadd.f32 %v355, %v356
      %v358 = vrot.slane %v357, 4
      %v359 = vadd.f32 %v357, %v358
      %v360 = vrot.slane %v359, 2
      %v361 = vadd.f32 %v359, %v360
      %v362 = vrot.slane %v361, 1
      %v363 = vadd.f32 %v361, %v362
      %v364 = vrcp.pop %v288
      %v365 = vrcp.pop %v297
      %v366 = vmul.f32 %v288, %v364
      %v367 = vmul.f32 %v297, %v365
      %v368 = vsub.f32 2.0, %v366
      %v369 = vsub.f32 2.0, %v367
      %v370 = vmul.f32 %v364, %v368
      %v371 = vmul.f32 %v365, %v369
      %v372 = vmul.f32 %v354, %v370
      %v373 = vmul.f32 %v363, %v371
      %v374 = vmul.f32 %v370, %v370
      %v375 = vmul.f32 %v371, %v371
      %v376 = vmul.f32 %v312, %v374
      %v377 = vmul.f32 %v321, %v375
      %v378 = vld [vmem:[#allocation2] ss:$2 sm:$0x3]
      %v381 = vcombine.low %v372, %v373
      %v383 = vunpack.c.l.s4 1966171168
      %v384 = vunpack.c.0.s8 %v383
      %v385 = vlaneseq
      %v386 = vshrl.u32 %v385, 7
      %v387 = vsub.s32 %v384, %v386
      %v388 = vrot.slane %v381, %v387
      %v390 = vunpack.c.l.s4 1966171168
      %v391 = vunpack.c.0.s8 %v390
      %v392 = vlaneseq
      %v393 = vshrl.u32 %v392, 7
      %v394 = vsub.s32 %v391, %v393
      %v395 = vrot.slane %v388, %v394
      %v397 = vadd.f32 %v378, %v395
      %v398 = vlaneseq
      %vm399 = vcmp.ge.s32.totalorder %v398, 0
      %vm400 = vcmp.lt.s32.totalorder %v398, 256
      %vm401 = vmand %vm399, %vm400
      %402 = vst.msk [vmem:[#allocation2] ss:$2 sm:$0x3] %vm401, %v397
      %s403 = scalar_lea.vmem [#allocation2], 1
      %v404 = vld [vmem:[%s403] ss:$2 sm:$0x3]
      %v407 = vcombine.low %v376, %v377
      %v409 = vunpack.c.l.s4 1966171168
      %v410 = vunpack.c.0.s8 %v409
      %v411 = vlaneseq
      %v412 = vshrl.u32 %v411, 7
      %v413 = vsub.s32 %v410, %v412
      %v414 = vrot.slane %v407, %v413
      %v416 = vunpack.c.l.s4 1966171168
      %v417 = vunpack.c.0.s8 %v416
      %v418 = vlaneseq
      %v419 = vshrl.u32 %v418, 7
      %v420 = vsub.s32 %v417, %v419
      %v421 = vrot.slane %v414, %v420
      %v423 = vadd.f32 %v404, %v421
      %424 = vst.msk [vmem:[%s403] ss:$2 sm:$0x3] %vm401, %v423
      // Predicated region
      $region33: #{tpu_custom_call.1} parent=27 // pred_check
        %p425 = pneg %p229
      $region34: #{tpu_custom_call.1} parent=27 // pred_check_branch
        %427 = sbr.rel (%p425) target = $region36
      $region35: #{tpu_custom_call.1} parent=27 // pred_region
        %v428 = vld [vmem:[#allocation2] sm:$0xf]
        %v431 = vunpack.c.l.s4 1983009808
        %v432 = vunpack.c.0.s8 %v431
        %v433 = vlaneseq
        %v434 = vshrl.u32 %v433, 7
        %v435 = vsub.s32 %v432, %v434
        %v436 = vrot.slane %v428, %v435
        %v437 = vcombine.high %v436, %v436
        %vm440 = vcmask 1041408
        %v441 = vsel %vm440, %v436, 0.0
        %v442 = vsel %vm440, %v437, 0.0
        %v443 = vadd.f32 %v441, %v442
        %444 = vadd.xlane.f32.xlu0 %v443
        %v445 = vpop.xlane.xlu0 %444
        %vm446 = vcmask 1024
        %447 = vst.msk [vmem:[%s227] sm:$0x3] %vm446, %v445
      $region36: #{tpu_custom_call.1} parent=27 // pred_fallthru
        _
      %s448 = sadd.s32 %s18, %s19
      %p449 = scmp.lt.s32.totalorder %s448, 1
      %s450 = scalar_select %p449, %s448, 1
      %s451 = smul.addr %s450, 2
      %s452 = scalar_lea.vmem %s2, %s451
      // Predicated region
      $region37: #{tpu_custom_call.1} parent=27 // pred_check
        %p453 = pneg %p112
      $region38: #{tpu_custom_call.1} parent=27 // pred_check_branch
        %455 = sbr.rel (%p453) target = $region40
      $region39: #{tpu_custom_call.1} parent=27 // pred_region
        %s456 = sadd.s32 %s18, %s19
      $region40: #{tpu_custom_call.1} parent=27 // pred_fallthru
        _
    $region28: #{tpu_custom_call.1} parent=5 // pred_fallthru
      _
    %p457 = scmp.le.s32.totalorder 2, %s8
    // Predicated region
    $region41: #{tpu_custom_call.1} parent=5 // pred_check
      %p458 = pneg %p457
    $region42: #{tpu_custom_call.1} parent=5 // pred_check_branch
      %460 = sbr.rel (%p458) target = $region44
    $region43: #{tpu_custom_call.1} parent=5 // pred_region
      %s461 = ssub.s32 %s8, 2
      // Predicated region
      $region45: #{tpu_custom_call.1} parent=43 // pred_check
        %p462 = pneg %p118
      $region46: #{tpu_custom_call.1} parent=43 // pred_check_branch
        %464 = sbr.rel (%p462) target = $region48
      $region47: #{tpu_custom_call.1} parent=43 // pred_region
        %s465 = sadd.s32 %s21, %s22
        %p466 = scmp.lt.s32.totalorder %s465, 1
        %s467 = scalar_select %p466, %s465, 1
        %s468 = smul.addr %s467, 2
        %s469 = scalar_lea.vmem %s2, %s468
      $region48: #{tpu_custom_call.1} parent=43 // pred_fallthru
        _
    $region44: #{tpu_custom_call.1} parent=5 // pred_fallthru
      _
  $region6: #{tpu_custom_call.1} parent=0 // loop_footer
    %s12 = sadd.s32 1, %s8
  $region7: #{tpu_custom_call.1} parent=0 // loop_footer_branch
    %7 = sbr.rel target = $region3
  $region8: #{tpu_custom_call.1} parent=0 // loop_exit
    _

</llo_original>
